<compile_context>
chip_gen: v7x
topology: tpu7x:2x2x1
jax: 0.10.0
libtpu: 0.0.40
codegen_flags: <defaults>
</compile_context>

<pallas_src>
import jax
import jax.numpy as jnp
from jax.experimental import pallas as pl
from jax.experimental.pallas import tpu as pltpu


def _softmax_lastdim_kernel(x_ref, o_ref):
    # Numerically-stable softmax over the last axis (== PyTorch dim=1 for [B, C]).
    x = x_ref[...]
    if not jnp.issubdtype(x_ref.dtype, jnp.floating):
        x = x.astype(jnp.float32)                       # integer logits -> f32 math
    m = jnp.max(x, axis=-1, keepdims=True)              # XLU cross-lane reduce (exact in input dtype)
    e = jnp.exp((x - m).astype(jnp.float32))            # EUP; single full-size f32 temporary
    s = jnp.sum(e, axis=-1, keepdims=True)              # XLU cross-lane reduce
    # Reciprocal on the EUP (free slot after exp) + one Newton step on the tiny (tb,1)
    # vector for full f32 accuracy; the big (tb,C) op is a plain VPU multiply.
    r = pl.reciprocal(s, approx=True)
    r = r * (2.0 - s * r)
    o_ref[...] = (e * r).astype(o_ref.dtype)


def _round_up(x: int, m: int) -> int:
    return ((x + m - 1) // m) * m


def _device_kind() -> str:
    try:
        return jax.devices()[0].device_kind.lower()
    except Exception:
        return ""


def generic_model_forward(x: jax.Array, *, target_tile_bytes: int | None = None) -> jax.Array:
    """Forward pass of GenericModel: (identity backbone) -> softmax(dim=1).

    x: [B, C] logits. Softmax over axis 1 (classes), matching torch softmax(dim=1).
    Accepts arbitrary B and C (partial edge blocks are masked by Pallas; no padding
    passes over HBM). Integer inputs produce a float32 output.
    """
    B, C = x.shape
    in_dtype = x.dtype
    is_float = jnp.issubdtype(in_dtype, jnp.floating)
    out_dtype = in_dtype if is_float else jnp.float32

    in_itemsize = jnp.dtype(in_dtype).itemsize
    out_itemsize = jnp.dtype(out_dtype).itemsize
    # Sublane alignment for the batch tile (8 rows per f32 vreg; packed dtypes need more).
    row_align = max(8, 32 // in_itemsize)

    kind = _device_kind()
    if target_tile_bytes is None:
        # Target size (in f32 bytes) of one (tb, C) tile, per TPU generation.
        if "v5" in kind:
            target_tile_bytes = 4 << 20      # ~0.8 TB/s HBM: 4 MiB amortizes the ~0.35us/step cost
        elif "v6" in kind:
            target_tile_bytes = 8 << 20      # 128 MiB physical VMEM, plenty of headroom
        else:
            # v7x (and unknown/newer): 3.2 TB/s per-TC HBM wants big tiles, but only
            # 64 MiB VMEM per TC -> keep the double-buffered footprint under ~48 MiB.
            target_tile_bytes = (8 << 20) if in_itemsize == 2 else (6 << 20)

    # VMEM cap: v5e/v6e have 128 MiB physical VMEM, v7x (and unknown) only 64 MiB.
    vmem_cap = (64 << 20) if ("v5" in kind or "v6" in kind) else (48 << 20)

    # Guard: the block spans the full class axis, so even the minimal (row_align, C)
    # tile must fit (double-buffered I/O + f32 temps) inside the VMEM budget.
    min_tile_vmem = row_align * C * (2 * (in_itemsize + out_itemsize) + 2 * 4) + (2 << 20)
    if min_tile_vmem > vmem_cap:
        # TODO(synk): add a C-blocked two-pass / online-softmax path for very wide class axes.
        raise ValueError(
            f"Class axis C={C} too large for a single-pass VMEM-resident softmax tile "
            f"({min_tile_vmem >> 20} MiB needed > {vmem_cap >> 20} MiB budget)."
        )

    # Batch tile: largest row_align-aligned tb such that one (tb, C) f32 tile ~= target bytes.
    if B <= row_align:
        tb = B                                              # single full-dim block
    else:
        tb_budget = max(row_align, (target_tile_bytes // (C * 4)) // row_align * row_align)
        tb = min(tb_budget, (B // row_align) * row_align)   # multiple of row_align, <= B
        # Ensure >= 2 (up to 4) grid steps when B allows: v7x megacore sharding across
        # both TCs plus a non-degenerate double-buffered pipeline ramp everywhere.
        steps_possible = B // row_align
        if steps_possible >= 2:
            min_steps = min(4, steps_possible)
            tb = min(tb, _round_up(pl.cdiv(B, min_steps), row_align))
        tb = max(tb, row_align)

    grid = (pl.cdiv(B, tb),)

    # VMEM budget: double-buffered in+out tiles (wire dtypes) + in-kernel f32 temporaries
    # + headroom, clamped to the per-generation cap.
    io_tile_bytes = tb * C * (in_itemsize + out_itemsize)   # one input + one output tile
    f32_tile_bytes = tb * C * 4
    vmem_limit = min(max(2 * io_tile_bytes + 2 * f32_tile_bytes + (4 << 20), 16 << 20),
                     vmem_cap)

    out = pl.pallas_call(
        _softmax_lastdim_kernel,
        out_shape=jax.ShapeDtypeStruct((B, C), out_dtype),
        grid_spec=pltpu.PrefetchScalarGridSpec(
            num_scalar_prefetch=0,
            grid=grid,
            # Class axis = full array dim (legal for any C); batch edge block is masked.
            in_specs=[pl.BlockSpec((tb, C), lambda i: (i, 0))],
            out_specs=pl.BlockSpec((tb, C), lambda i: (i, 0)),
        ),
        compiler_params=pltpu.CompilerParams(
            dimension_semantics=("parallel",),      # v7x: shard batch axis across both TCs
            vmem_limit_bytes=int(vmem_limit),
        ),
    )(x)
    return out


if __name__ == "__main__":
    key = jax.random.PRNGKey(0)
    k0, k1, k2, k3 = jax.random.split(key, 4)

    # --- main check: small shape consistent with the module's [batch, classes] head ---
    B, C = 8, 128
    x = jax.random.normal(k0, (B, C), dtype=jnp.float32)
    out = jax.block_until_ready(generic_model_forward(x))
    ref = jax.nn.softmax(x, axis=1)
    assert out.shape == (B, C)
    assert jnp.allclose(out, ref, atol=1e-5, rtol=1e-5)
    assert jnp.allclose(jnp.sum(out, axis=1), jnp.ones((B,)), atol=1e-5)

    # --- ragged batch + non-multiple-of-128 class count (masked edge blocks, no padding) ---
    x2 = jax.random.normal(k1, (13, 1000), dtype=jnp.float32)
    out2 = jax.block_until_ready(generic_model_forward(x2))
    ref2 = jax.nn.softmax(x2, axis=1)
    assert out2.shape == (13, 1000)
    assert jnp.allclose(out2, ref2, atol=1e-5, rtol=1e-5)
    assert jnp.allclose(jnp.sum(out2, axis=1), jnp.ones((13,)), atol=1e-5)

    # --- multi-step grid (exercises the >=2-step tiling path) ---
    x3 = jax.random.normal(k2, (300, 512), dtype=jnp.float32)
    out3 = jax.block_until_ready(generic_model_forward(x3))
    ref3 = jax.nn.softmax(x3, axis=1)
    assert jnp.allclose(out3, ref3, atol=1e-5, rtol=1e-5)

    # --- bf16 I/O path (HBM traffic halved; math still f32 in-kernel) ---
    x4 = jax.random.normal(k3, (32, 256), dtype=jnp.bfloat16)
    out4 = jax.block_until_ready(generic_model_forward(x4))
    ref4 = jax.nn.softmax(x4.astype(jnp.float32), axis=1).astype(jnp.bfloat16)
    assert out4.dtype == jnp.bfloat16
    assert jnp.allclose(out4.astype(jnp.float32), ref4.astype(jnp.float32),
                        atol=1e-2, rtol=1e-2)

    # --- integer logits: output must be float32 (torch would reject/promote ints) ---
    x5 = jax.random.randint(k0, (8, 128), -5, 5, dtype=jnp.int32)
    out5 = jax.block_until_ready(generic_model_forward(x5))
    ref5 = jax.nn.softmax(x5.astype(jnp.float32), axis=1)
    assert out5.dtype == jnp.float32
    assert jnp.allclose(out5, ref5, atol=1e-5, rtol=1e-5)

    print("KERNEL_OK")
</pallas_src>

<mosaic_0001>
module attributes {stable_mosaic.version = 11 : i64} {
  func.func @_softmax_lastdim_kernel(%arg0: i32, %arg1: memref<8x128xf32, #tpu.memory_space<vmem>>, %arg2: memref<8x128xf32, #tpu.memory_space<vmem>>) attributes {dimension_semantics = [#tpu.dimension_semantics<parallel>], iteration_bounds = array<i64: 1>, scalar_prefetch = 0 : i64, scratch_operands = 0 : i64, tpu.core_type = #tpu.core_type<tc>, window_params = [{transform_indices = @transform_0, window_bounds = array<i64: 8, 128>}, {transform_indices = @transform_1, window_bounds = array<i64: 8, 128>}]} {
    %c0 = arith.constant 0 : index
    %c0_0 = arith.constant 0 : index
    %0 = vector.load %arg1[%c0, %c0_0] : memref<8x128xf32, #tpu.memory_space<vmem>>, vector<8x128xf32>
    %cst = arith.constant dense<0xFF800000> : vector<8xf32>
    %1 = vector.multi_reduction <maximumf>, %0, %cst [1] : vector<8x128xf32> to vector<8xf32>
    %2 = vector.shape_cast %1 : vector<8xf32> to vector<8x1xf32>
    %3 = vector.broadcast %2 : vector<8x1xf32> to vector<8x128xf32>
    %4 = arith.subf %0, %3 : vector<8x128xf32>
    %5 = math.exp %4 : vector<8x128xf32>
    %cst_1 = arith.constant dense<0.000000e+00> : vector<8xf32>
    %6 = vector.multi_reduction <add>, %5, %cst_1 [1] : vector<8x128xf32> to vector<8xf32>
    %7 = vector.shape_cast %6 : vector<8xf32> to vector<8x1xf32>
    %8 = tpu.reciprocal %7 {approx = true} : vector<8x1xf32> -> vector<8x1xf32>
    %9 = arith.mulf %7, %8 : vector<8x1xf32>
    %cst_2 = arith.constant 2.000000e+00 : f32
    %10 = vector.broadcast %cst_2 : f32 to vector<8x1xf32>
    %11 = arith.subf %10, %9 : vector<8x1xf32>
    %12 = arith.mulf %8, %11 : vector<8x1xf32>
    %13 = vector.broadcast %12 : vector<8x1xf32> to vector<8x128xf32>
    %14 = arith.mulf %5, %13 : vector<8x128xf32>
    %c0_3 = arith.constant 0 : index
    %c0_4 = arith.constant 0 : index
    %15 = vector.load %arg2[%c0_3, %c0_4] : memref<8x128xf32, #tpu.memory_space<vmem>>, vector<8x128xf32>
    tpu.vector_store %arg2[%c0_3, %c0_4], %14 {strides = array<i32>} : memref<8x128xf32, #tpu.memory_space<vmem>>, vector<8x128xf32>,
    return
  }
  func.func @transform_0(%arg0: i32) -> (i32, i32) {
    %c0_i32 = arith.constant 0 : i32
    %c0_i32_0 = arith.constant 0 : i32
    return %arg0, %c0_i32 : i32, i32
  }
  func.func @transform_1(%arg0: i32) -> (i32, i32) {
    %c0_i32 = arith.constant 0 : i32
    %c0_i32_0 = arith.constant 0 : i32
    return %arg0, %c0_i32 : i32, i32
  }
}

</mosaic_0001>

<llo_original>
// kernel: tpu_custom_call.1
$region0: #{tpu_custom_call.1}
  #allocation0 [shape = 'u32[]', space=smem, size = 0x4, offset = 0x4, fixed_abs, tag = 'smem constant byte address 0x4 - core index']
  #allocation1 [shape = 'u32[144,128]{1,0:T(1,128)}', space=vmem, size = 0x12000, scoped, tag = 'internal scratch']
  %s0 = inlined_call_operand.hbm [shape: f32[8,128], index: 0, kind: input, shape index: {}]
  %s1 = inlined_call_operand.hbm [shape: f32[8,128], index: 1, kind: output, shape index: {}]
  %s2 = sld [smem:[#allocation0]]
  $region18: #{tpu_custom_call.1} parent=0
    _
  %s4 = ssub.s32 1, %s2
  %s5 = scalar_select 0, %s4, %s2
  $region1: #{tpu_custom_call.1} parent=0
    #allocation2 [shape = 'u8[4096]{0}', space=vmem, size = 0x1000, scoped, tag = 'input window, operand 0, single buffered']
    #allocation3 [shape = 's32[1]{0}', space=sflag, size = 0x4, scoped, tag = 'scoped memory for tpu_custom_call.1']
    #allocation4 [shape = 's32[1]{0}', space=sflag, size = 0x4, scoped, tag = 'scoped memory for tpu_custom_call.1']
    #allocation5 [shape = 'u8[4096]{0}', space=vmem, size = 0x1000, scoped, tag = 'output window, operand 0, single buffered']
    %6 = vsyncpa [#allocation3], 0
    %7 = vsyncpa [#allocation4], 0
    // Predicated region
    $region2: #{tpu_custom_call.1} parent=1 // pred_check
      _
    $region3: #{tpu_custom_call.1} parent=1 // pred_check_branch
      %9 = sbr.rel (0) target = $region5
    $region4: #{tpu_custom_call.1} parent=1 // pred_region
      %s11 = ssub.s32 128, 128
      %12 = vsyncadd [#allocation3], %s11
      %s14 = sshll.u32 [#allocation2], 4
      %s15 = int_to_ptr.vmem [resolvable:$true] %s14
      %17 = dma.hbm_to_vmem [thread:$0]  %s0, 128, %s15, [#allocation3]
    $region5: #{tpu_custom_call.1} parent=1 // pred_fallthru
      _
    // Predicated region
    $region6: #{tpu_custom_call.1} parent=1 // pred_check
      _
    $region7: #{tpu_custom_call.1} parent=1 // pred_check_branch
      %19 = sbr.rel (0) target = $region9
    $region8: #{tpu_custom_call.1} parent=1 // pred_region
      %20 = dma.done [#allocation3], 128
    $region9: #{tpu_custom_call.1} parent=1 // pred_fallthru
      _
    %v21 = vld [vmem:[#allocation2] sm:$0xff]
    %22 = vmax.xlane.f32.xlu0 %v21
    %v23 = vpop.xlane.xlu0 %22
    %v24 = vsub.f32 %v21, %v23
    %v25 = vmul.f32 %v24, 1.442695
    %v26 = vpow.pop %v25
    %27 = vadd.xlane.f32.xlu0 %v26
    %v28 = vpop.xlane.xlu0 %27
    %v29 = vrcp.pop %v28
    %v30 = vmul.f32 %v28, %v29
    %v31 = vsub.f32 2.0, %v30
    %v32 = vmul.f32 %v29, %v31
    %v33 = vmul.f32 %v26, %v32
    %34 = vst [vmem:[#allocation5] sm:$0xff] %v33
    // Predicated region
    $region10: #{tpu_custom_call.1} parent=1 // pred_check
      _
    $region11: #{tpu_custom_call.1} parent=1 // pred_check_branch
      %36 = sbr.rel (0) target = $region13
    $region12: #{tpu_custom_call.1} parent=1 // pred_region
      %s38 = ssub.s32 128, 128
      %39 = vsyncadd [#allocation4], %s38
      %s41 = sshll.u32 [#allocation5], 4
      %s42 = int_to_ptr.vmem [resolvable:$true] %s41
      %44 = dma.vmem_to_hbm [thread:$0]  %s42, 128, %s1, [#allocation4]
    $region13: #{tpu_custom_call.1} parent=1 // pred_fallthru
      _
    // Predicated region
    $region14: #{tpu_custom_call.1} parent=1 // pred_check
      _
    $region15: #{tpu_custom_call.1} parent=1 // pred_check_branch
      %46 = sbr.rel (0) target = $region17
    $region16: #{tpu_custom_call.1} parent=1 // pred_region
      %47 = dma.done [#allocation4], 128
    $region17: #{tpu_custom_call.1} parent=1 // pred_fallthru
      _
    %48 = vsyncpa [#allocation3], 1
    %49 = vsyncpa [#allocation4], 1

</llo_original>
